<compile_context>
chip_gen: v7x
topology: tpu7x:2x2x1
jax: 0.10.0
libtpu: 0.0.40
codegen_flags: <defaults>
</compile_context>

<pallas_src>
import jax
import jax.numpy as jnp
from jax.experimental import pallas as pl
from jax.experimental.pallas import tpu as pltpu


def _linear_segment_kernel(progress_ref, params_ref, out_ref):
    # All-scalar path: SMEM reads -> sreg math -> SMEM write.
    p = progress_ref[0]        # f32 scalar: progress
    start = params_ref[0]      # f32 scalar: start_value
    end = params_ref[1]        # f32 scalar: end_value
    out_ref[0] = start + p * (end - start)


@jax.jit
def _segment_forward(progress, params):
    """progress: f32[1]; params: f32[2] = (start_value, end_value)."""
    out = pl.pallas_call(
        _linear_segment_kernel,
        out_shape=jax.ShapeDtypeStruct((1,), jnp.float32),
        in_specs=[
            pl.BlockSpec(memory_space=pltpu.MemorySpace.SMEM),   # progress
            pl.BlockSpec(memory_space=pltpu.MemorySpace.SMEM),   # (start, end)
        ],
        out_specs=pl.BlockSpec(memory_space=pltpu.MemorySpace.SMEM),
    )(progress, params)
    return out[0]


class LinearWeightScheduleSegment:
    """Pallas mirror of the PyTorch LinearWeightScheduleSegment module."""

    def __init__(self, end_point: float, start_value: float, end_value: float):
        self.end_point = float(end_point)
        self._start_value = float(start_value)
        self._end_value = float(end_value)
        # Hoisted, one-time packing: only `progress` changes per call.
        self._params = jnp.array([self._start_value, self._end_value],
                                 dtype=jnp.float32)

    def forward(self, progress: float):
        p = jnp.asarray(progress, jnp.float32).reshape(1)
        return _segment_forward(p, self._params)

    __call__ = forward

    def __repr__(self):
        return 'LinearWeightScheduleSegment({}, {}, {})'.format(
            self.end_point, self._start_value, self._end_value)


def _ref_forward(progress, start_value, end_value):
    """float32 mirror of the PyTorch forward (same precision as the kernel)."""
    p = jnp.float32(progress)
    s = jnp.float32(start_value)
    e = jnp.float32(end_value)
    return float(s + p * (e - s))


if __name__ == "__main__":
    key = jax.random.PRNGKey(0)
    k1, k2 = jax.random.split(key)

    # A few deterministic segments (start/end values drawn once).
    n_seg = 4
    start_vals = jax.random.uniform(k1, (n_seg,), dtype=jnp.float32)
    end_vals = jax.random.uniform(k2, (n_seg,), dtype=jnp.float32)
    end_points = [0.1, 0.3, 0.7, 1.0]

    segments = [
        LinearWeightScheduleSegment(end_points[i],
                                    float(start_vals[i]),
                                    float(end_vals[i]))
        for i in range(n_seg)
    ]

    test_progress = [0.0, 0.05, 0.25, 0.5, 0.75, 1.0]

    ok = True
    for seg in segments:
        for p in test_progress:
            got = float(jax.block_until_ready(seg(p)))
            want = _ref_forward(p, seg._start_value, seg._end_value)
            if abs(got - want) > 1e-5:
                ok = False
                print("MISMATCH {} progress={}: got {}, want {}".format(
                    seg, p, got, want))

    # TODO(synk): the piecewise WeightSchedule container (segment selection by
    # end_point + progress remapping) is outside this module's spec; only the
    # LinearWeightScheduleSegment forward is implemented.  If needed, its
    # selection loop belongs on this same SMEM scalar path (lax.fori_loop over
    # a small f32 SMEM table), or better, fused into the consumer kernel.

    if ok:
        print("KERNEL_OK")
</pallas_src>

<mosaic_0001>
module attributes {stable_mosaic.version = 11 : i64} {
  func.func @_linear_segment_kernel(%arg0: memref<1xf32, #tpu.memory_space<smem>>, %arg1: memref<2xf32, #tpu.memory_space<smem>>, %arg2: memref<1xf32, #tpu.memory_space<smem>>) attributes {dimension_semantics = [], scalar_prefetch = 0 : i64, scratch_operands = 0 : i64, tpu.core_type = #tpu.core_type<tc>} {
    %c0 = arith.constant 0 : index
    %0 = memref.load %arg0[%c0] : memref<1xf32, #tpu.memory_space<smem>>
    %c0_0 = arith.constant 0 : index
    %1 = memref.load %arg1[%c0_0] : memref<2xf32, #tpu.memory_space<smem>>
    %c1 = arith.constant 1 : index
    %2 = memref.load %arg1[%c1] : memref<2xf32, #tpu.memory_space<smem>>
    %3 = arith.subf %2, %1 : f32
    %4 = arith.mulf %0, %3 : f32
    %5 = arith.addf %1, %4 : f32
    %c0_1 = arith.constant 0 : index
    %6 = memref.load %arg2[%c0_1] : memref<1xf32, #tpu.memory_space<smem>>
    memref.store %5, %arg2[%c0_1] : memref<1xf32, #tpu.memory_space<smem>>
    return
  }
}

</mosaic_0001>

<llo_original>
// kernel: _segment_forward.1
$region0: #{_segment_forward.1}
  #allocation0 [shape = 'u32[]', space=smem, size = 0x4, offset = 0x4, fixed_abs, tag = 'smem constant byte address 0x4 - core index']
  #allocation1 [shape = 'u32[144,128]{1,0:T(1,128)}', space=vmem, size = 0x12000, scoped, tag = 'internal scratch']
  #allocation2 [shape = 'f32[1]{0:T(128)S(6)}', space=smem, size = 0x200, scoped, tag = 'scoped memory for _segment_forward.1']
  %s0 = inlined_call_operand.<no memory space> [shape: f32[1], index: 0, kind: input, shape index: {}]
  %s1 = inlined_call_operand.vmem [shape: f32[2], index: 1, kind: input, shape index: {}]
  %s2 = inlined_call_operand.hbm [shape: f32[1], index: 2, kind: output, shape index: {}]
  %s3 = sld [smem:[#allocation0]]
  $region22: #{_segment_forward.1} parent=0
    _
  %s5 = ssub.s32 1, %s3
  %s6 = scalar_select 0, %s5, %s3
  %7 = sst [smem:[#allocation2]] %s0
  $region1: #{_segment_forward.1} parent=0
    #allocation3 [shape = 'u8[512]{0}', space=smem, size = 0x200, scoped, tag = 'input window, operand 1, single buffered']
    #allocation4 [shape = 's32[1]{0}', space=sflag, size = 0x4, scoped, tag = 'scoped memory for _segment_forward.1']
    #allocation5 [shape = 's32[1]{0}', space=sflag, size = 0x4, scoped, tag = 'scoped memory for _segment_forward.1']
    #allocation6 [shape = 'u8[512]{0}', space=smem, size = 0x200, scoped, tag = 'output window, operand 0, single buffered']
    %8 = vsyncpa [#allocation5], 0
    %9 = vsyncpa [#allocation4], 0
    // Predicated region
    $region2: #{_segment_forward.1} parent=1 // pred_check
      _
    $region3: #{_segment_forward.1} parent=1 // pred_check_branch
      %11 = sbr.rel (0) target = $region5
    $region4: #{_segment_forward.1} parent=1 // pred_region
      _
    $region5: #{_segment_forward.1} parent=1 // pred_fallthru
      _
    // Predicated region
    $region6: #{_segment_forward.1} parent=1 // pred_check
      _
    $region7: #{_segment_forward.1} parent=1 // pred_check_branch
      %13 = sbr.rel (0) target = $region9
    $region8: #{_segment_forward.1} parent=1 // pred_region
      %s15 = ssub.s32 16, 16
      %16 = vsyncadd [#allocation5], %s15
      %s18 = sshll.u32 %s1, 4
      %s19 = int_to_ptr.vmem [resolvable:$true] %s18
      %21 = dma.vmem_to_smem %s19, 16, [#allocation3], [#allocation5]
    $region9: #{_segment_forward.1} parent=1 // pred_fallthru
      _
    // Predicated region
    $region10: #{_segment_forward.1} parent=1 // pred_check
      _
    $region11: #{_segment_forward.1} parent=1 // pred_check_branch
      %23 = sbr.rel (0) target = $region13
    $region12: #{_segment_forward.1} parent=1 // pred_region
      %24 = dma.done [#allocation5], 16
    $region13: #{_segment_forward.1} parent=1 // pred_fallthru
      _
    %25 = sfence
    %s26 = sld [smem:[#allocation2]]
    %s27 = sld [smem:[#allocation3]]
    %s28 = sld [smem:[#allocation3 + $0x1]]
    %s29 = ssub.f32 %s28, %s27
    %s30 = smul.f32 %s26, %s29
    %s31 = sadd.f32 %s27, %s30
    %s32 = scalar_lea.smem [#allocation6], 0
    %33 = sst [smem:[%s32]] %s31
    // Predicated region
    $region14: #{_segment_forward.1} parent=1 // pred_check
      _
    $region15: #{_segment_forward.1} parent=1 // pred_check_branch
      %35 = sbr.rel (0) target = $region17
    $region16: #{_segment_forward.1} parent=1 // pred_region
      %s37 = ssub.s32 16, 16
      %38 = vsyncadd [#allocation4], %s37
      %41 = dma.smem_to_hbm [#allocation6], 16, %s2, [#allocation4]
    $region17: #{_segment_forward.1} parent=1 // pred_fallthru
      _
    // Predicated region
    $region18: #{_segment_forward.1} parent=1 // pred_check
      _
    $region19: #{_segment_forward.1} parent=1 // pred_check_branch
      %43 = sbr.rel (0) target = $region21
    $region20: #{_segment_forward.1} parent=1 // pred_region
      %44 = dma.done [#allocation4], 16
    $region21: #{_segment_forward.1} parent=1 // pred_fallthru
      _
    %45 = sfence
    %46 = vsyncpa [#allocation4], 1
    %47 = vsyncpa [#allocation5], 1

</llo_original>
